<compile_context>
chip_gen: v7x
topology: tpu7x:2x2x1
jax: 0.10.0
libtpu: 0.0.40
codegen_flags: <defaults>
</compile_context>

<pallas_src>
import jax
import jax.numpy as jnp
from jax.experimental import pallas as pl
from jax.experimental.pallas import tpu as pltpu

INPUT_SIZE = 20
ENCODING_SIZE = 1


def _round_up(a, b):
    return -(-a // b) * b


def _ae_kernel(x_ref, we_ref, be_ref, wd_ref, bd_ref, o_ref):
    """One batch tile, natural layout: batch rows on sublanes, features on lanes."""
    x = x_ref[...]                                          # (bm, in_sz)
    we = we_ref[...]                                        # (1, in_sz)

    # encoder: Linear(in_sz -> 1) + ReLU  == VPU mul + cross-lane (XLU) reduce.
    enc = jnp.sum(x * we, axis=1, keepdims=True) + be_ref[0, 0]   # (bm, 1)
    enc = jnp.maximum(enc, 0.0)

    # decoder: Linear(1 -> in_sz) + Sigmoid == broadcast outer product (VPU) + EUP.
    dec = enc * wd_ref[...] + bd_ref[...]                   # (bm,1)*(1,in)+(1,in)
    o_ref[...] = jax.nn.sigmoid(dec).astype(o_ref.dtype)


def autoencoder_forward(x, w_enc, b_enc, w_dec, b_dec, *, block_m=None):
    """x: (B, in_sz) f32.  w_enc: (in_sz, 1), b_enc: (1, 1), w_dec: (1, in_sz),
    b_dec: (1, in_sz).  Returns sigmoid(relu(x @ w_enc + b_enc) @ w_dec + b_dec)."""
    B, in_sz = x.shape
    assert w_enc.shape == (in_sz, 1), "kernel is specialized to encoding_size == 1"

    # Batch tile: small B -> single full-extent tile; large B -> 8192-row tiles
    # (~640 KB of HBM per tile) so the DMA pipeline hides per-step overhead.
    if block_m is None:
        block_m = min(_round_up(B, 8), 8192)
    assert block_m % 8 == 0, "block_m must be a multiple of 8 (sublane granularity)"

    Bp = _round_up(B, block_m)
    if Bp != B:
        x = jnp.pad(x, ((0, Bp - B), (0, 0)))               # zero rows sliced off below

    we_row = w_enc.reshape(1, in_sz)                         # (1, in_sz) on lanes
    wd_row = w_dec.reshape(1, in_sz)
    bd_row = b_dec.reshape(1, in_sz)
    be_s = b_enc.reshape(1, 1)                               # scalar -> SMEM

    grid = (Bp // block_m,)

    # VMEM: in + out tiles, double buffered, lane-padded 20 -> 128, + headroom.
    tile_vmem = block_m * 128 * 4
    vmem_limit = min(32 * 1024 * 1024, max(4 * 1024 * 1024, 4 * tile_vmem + (1 << 20)))

    cost = pl.CostEstimate(
        flops=4 * B * in_sz,                 # enc mul+reduce, dec mul+add
        transcendentals=B * in_sz,           # sigmoid
        bytes_accessed=2 * B * in_sz * 4 + (3 * in_sz + 1) * 4,
    )

    out = pl.pallas_call(
        _ae_kernel,
        out_shape=jax.ShapeDtypeStruct((Bp, in_sz), x.dtype),
        grid_spec=pltpu.PrefetchScalarGridSpec(
            num_scalar_prefetch=0,
            grid=grid,
            in_specs=[
                pl.BlockSpec((block_m, in_sz), lambda i: (i, 0)),        # x tile
                pl.BlockSpec((1, in_sz), lambda i: (0, 0)),              # W_enc row
                pl.BlockSpec(memory_space=pltpu.MemorySpace.SMEM),       # b_enc scalar
                pl.BlockSpec((1, in_sz), lambda i: (0, 0)),              # W_dec row
                pl.BlockSpec((1, in_sz), lambda i: (0, 0)),              # b_dec row
            ],
            out_specs=pl.BlockSpec((block_m, in_sz), lambda i: (i, 0)),
        ),
        compiler_params=pltpu.CompilerParams(
            dimension_semantics=("parallel",),
            vmem_limit_bytes=vmem_limit,
        ),
        cost_estimate=cost,
    )(x, we_row, be_s, wd_row, bd_row)

    return out[:B, :]


def init_params(key, input_size=INPUT_SIZE, encoding_size=ENCODING_SIZE):
    """Deterministic init mirroring nn.Linear's U(-1/sqrt(fan_in), 1/sqrt(fan_in))."""
    k1, k2, k3, k4 = jax.random.split(key, 4)
    bound_e = 1.0 / jnp.sqrt(jnp.float32(input_size))
    bound_d = 1.0 / jnp.sqrt(jnp.float32(encoding_size))
    # stored as (in, out) so the reference does x @ W
    w_enc = jax.random.uniform(k1, (input_size, encoding_size), jnp.float32,
                               -bound_e, bound_e)
    b_enc = jax.random.uniform(k2, (1, encoding_size), jnp.float32,
                               -bound_e, bound_e)
    w_dec = jax.random.uniform(k3, (encoding_size, input_size), jnp.float32,
                               -bound_d, bound_d)
    b_dec = jax.random.uniform(k4, (1, input_size), jnp.float32,
                               -bound_d, bound_d)
    return w_enc, b_enc, w_dec, b_dec


def autoencoder_ref(x, w_enc, b_enc, w_dec, b_dec):
    enc = jnp.maximum(x @ w_enc + b_enc, 0.0)
    return jax.nn.sigmoid(enc @ w_dec + b_dec)


if __name__ == "__main__":
    key = jax.random.PRNGKey(0)
    kx, kx2, kp = jax.random.split(key, 3)
    params = init_params(kp)

    # Small default case (single full-extent tile).
    B = 8
    x = jax.random.uniform(kx, (B, INPUT_SIZE), jnp.float32)
    out = jax.block_until_ready(autoencoder_forward(x, *params))
    ref = autoencoder_ref(x, *params)
    assert out.shape == (B, INPUT_SIZE)
    assert jnp.allclose(out, ref, atol=1e-5, rtol=1e-5)

    # Tiled / padded / multi-grid-step path (ragged batch, 128-row tiles).
    B2 = 300
    x2 = jax.random.uniform(kx2, (B2, INPUT_SIZE), jnp.float32)
    out2 = jax.block_until_ready(autoencoder_forward(x2, *params, block_m=128))
    ref2 = autoencoder_ref(x2, *params)
    assert out2.shape == (B2, INPUT_SIZE)
    assert jnp.allclose(out2, ref2, atol=1e-5, rtol=1e-5)

    print("KERNEL_OK")
</pallas_src>

<mosaic_0001>
module attributes {stable_mosaic.version = 11 : i64} {
  func.func @_ae_kernel(%arg0: i32, %arg1: memref<8x20xf32, #tpu.memory_space<vmem>>, %arg2: memref<1x20xf32, #tpu.memory_space<vmem>>, %arg3: memref<1x1xf32, #tpu.memory_space<smem>>, %arg4: memref<1x20xf32, #tpu.memory_space<vmem>>, %arg5: memref<1x20xf32, #tpu.memory_space<vmem>>, %arg6: memref<8x20xf32, #tpu.memory_space<vmem>>) attributes {dimension_semantics = [#tpu.dimension_semantics<parallel>], iteration_bounds = array<i64: 1>, scalar_prefetch = 0 : i64, scratch_operands = 0 : i64, tpu.core_type = #tpu.core_type<tc>, window_params = [{transform_indices = @transform_0, window_bounds = array<i64: 8, 20>}, {pipeline_mode = #tpu.pipeline_mode<synchronous>, transform_indices = @transform_1, window_bounds = array<i64: 1, 20>}, {transform_indices = @transform_2, window_bounds = array<i64: 1, 1>}, {pipeline_mode = #tpu.pipeline_mode<synchronous>, transform_indices = @transform_3, window_bounds = array<i64: 1, 20>}, {pipeline_mode = #tpu.pipeline_mode<synchronous>, transform_indices = @transform_4, window_bounds = array<i64: 1, 20>}, {transform_indices = @transform_5, window_bounds = array<i64: 8, 20>}]} {
    %c0 = arith.constant 0 : index
    %c0_0 = arith.constant 0 : index
    %0 = vector.load %arg1[%c0, %c0_0] : memref<8x20xf32, #tpu.memory_space<vmem>>, vector<8x20xf32>
    %c0_1 = arith.constant 0 : index
    %c0_2 = arith.constant 0 : index
    %1 = vector.load %arg2[%c0_1, %c0_2] : memref<1x20xf32, #tpu.memory_space<vmem>>, vector<1x20xf32>
    %2 = vector.broadcast %1 : vector<1x20xf32> to vector<8x20xf32>
    %3 = arith.mulf %0, %2 : vector<8x20xf32>
    %cst = arith.constant dense<0.000000e+00> : vector<8xf32>
    %4 = vector.multi_reduction <add>, %3, %cst [1] : vector<8x20xf32> to vector<8xf32>
    %5 = vector.shape_cast %4 : vector<8xf32> to vector<8x1xf32>
    %c0_3 = arith.constant 0 : index
    %c0_4 = arith.constant 0 : index
    %6 = memref.load %arg3[%c0_3, %c0_4] : memref<1x1xf32, #tpu.memory_space<smem>>
    %7 = vector.broadcast %6 : f32 to vector<8x1xf32>
    %8 = arith.addf %5, %7 : vector<8x1xf32>
    %cst_5 = arith.constant 0.000000e+00 : f32
    %9 = vector.broadcast %cst_5 : f32 to vector<8x1xf32>
    %10 = arith.maximumf %8, %9 : vector<8x1xf32>
    %c0_6 = arith.constant 0 : index
    %c0_7 = arith.constant 0 : index
    %11 = vector.load %arg4[%c0_6, %c0_7] : memref<1x20xf32, #tpu.memory_space<vmem>>, vector<1x20xf32>
    %12 = vector.broadcast %10 : vector<8x1xf32> to vector<8x20xf32>
    %13 = vector.broadcast %11 : vector<1x20xf32> to vector<8x20xf32>
    %14 = arith.mulf %12, %13 : vector<8x20xf32>
    %c0_8 = arith.constant 0 : index
    %c0_9 = arith.constant 0 : index
    %15 = vector.load %arg5[%c0_8, %c0_9] : memref<1x20xf32, #tpu.memory_space<vmem>>, vector<1x20xf32>
    %16 = vector.broadcast %15 : vector<1x20xf32> to vector<8x20xf32>
    %17 = arith.addf %14, %16 : vector<8x20xf32>
    %18 = arith.negf %17 : vector<8x20xf32>
    %19 = math.exp %18 : vector<8x20xf32>
    %cst_10 = arith.constant 1.000000e+00 : f32
    %20 = vector.broadcast %cst_10 : f32 to vector<8x20xf32>
    %21 = arith.addf %20, %19 : vector<8x20xf32>
    %22 = arith.divf %20, %21 : vector<8x20xf32>
    %c0_11 = arith.constant 0 : index
    %c0_12 = arith.constant 0 : index
    %23 = vector.load %arg6[%c0_11, %c0_12] : memref<8x20xf32, #tpu.memory_space<vmem>>, vector<8x20xf32>
    tpu.vector_store %arg6[%c0_11, %c0_12], %22 {strides = array<i32>} : memref<8x20xf32, #tpu.memory_space<vmem>>, vector<8x20xf32>,
    return
  }
  func.func @transform_0(%arg0: i32) -> (i32, i32) {
    %c0_i32 = arith.constant 0 : i32
    %c0_i32_0 = arith.constant 0 : i32
    return %arg0, %c0_i32 : i32, i32
  }
  func.func @transform_1(%arg0: i32) -> (i32, i32) {
    %c0_i32 = arith.constant 0 : i32
    %c0_i32_0 = arith.constant 0 : i32
    %c0_i32_1 = arith.constant 0 : i32
    return %c0_i32, %c0_i32_0 : i32, i32
  }
  func.func @transform_2(%arg0: i32) -> (i32, i32) {
    %c0_i32 = arith.constant 0 : i32
    %c0_i32_0 = arith.constant 0 : i32
    %c0_i32_1 = arith.constant 0 : i32
    return %c0_i32, %c0_i32_0 : i32, i32
  }
  func.func @transform_3(%arg0: i32) -> (i32, i32) {
    %c0_i32 = arith.constant 0 : i32
    %c0_i32_0 = arith.constant 0 : i32
    %c0_i32_1 = arith.constant 0 : i32
    return %c0_i32, %c0_i32_0 : i32, i32
  }
  func.func @transform_4(%arg0: i32) -> (i32, i32) {
    %c0_i32 = arith.constant 0 : i32
    %c0_i32_0 = arith.constant 0 : i32
    %c0_i32_1 = arith.constant 0 : i32
    return %c0_i32, %c0_i32_0 : i32, i32
  }
  func.func @transform_5(%arg0: i32) -> (i32, i32) {
    %c0_i32 = arith.constant 0 : i32
    %c0_i32_0 = arith.constant 0 : i32
    return %arg0, %c0_i32 : i32, i32
  }
}

</mosaic_0001>

<llo_original>
// kernel: tpu_custom_call.1
$region0: #{tpu_custom_call.1}
  #allocation0 [shape = 'u32[]', space=smem, size = 0x4, offset = 0x4, fixed_abs, tag = 'smem constant byte address 0x4 - core index']
  #allocation1 [shape = 'u32[144,128]{1,0:T(1,128)}', space=vmem, size = 0x12000, scoped, tag = 'internal scratch']
  #allocation2 [shape = 'f32[1,1]{1,0:T(1,128)S(6)}', space=smem, size = 0x200, scoped, tag = 'scoped memory for tpu_custom_call.1']
  %s0 = inlined_call_operand.hbm [shape: f32[8,20], index: 0, kind: input, shape index: {}]
  %s1 = inlined_call_operand.vmem [shape: f32[1,20], index: 1, kind: input, shape index: {}]
  %s2 = inlined_call_operand.<no memory space> [shape: f32[1,1], index: 2, kind: input, shape index: {}]
  %s3 = inlined_call_operand.vmem [shape: f32[1,20], index: 3, kind: input, shape index: {}]
  %s4 = inlined_call_operand.vmem [shape: f32[1,20], index: 4, kind: input, shape index: {}]
  %s5 = inlined_call_operand.hbm [shape: f32[8,20], index: 5, kind: output, shape index: {}]
  %s6 = sld [smem:[#allocation0]]
  $region34: #{tpu_custom_call.1} parent=0
    _
  %s8 = ssub.s32 1, %s6
  %s9 = scalar_select 0, %s8, %s6
  %10 = sst [smem:[#allocation2]] %s2
  $region1: #{tpu_custom_call.1} parent=0
    #allocation3 [shape = 'u8[4096]{0}', space=vmem, size = 0x1000, scoped, tag = 'input window, operand 0, single buffered']
    #allocation4 [shape = 's32[1]{0}', space=sflag, size = 0x4, scoped, tag = 'scoped memory for tpu_custom_call.1']
    #allocation5 [shape = 's32[1]{0}', space=sflag, size = 0x4, scoped, tag = 'scoped memory for tpu_custom_call.1']
    #allocation6 [shape = 'u8[4096]{0}', space=vmem, size = 0x1000, scoped, tag = 'output window, operand 0, single buffered']
    %11 = vsyncpa [#allocation4], 0
    %12 = vsyncpa [#allocation5], 0
    // Predicated region
    $region2: #{tpu_custom_call.1} parent=1 // pred_check
      _
    $region3: #{tpu_custom_call.1} parent=1 // pred_check_branch
      %14 = sbr.rel (0) target = $region5
    $region4: #{tpu_custom_call.1} parent=1 // pred_region
      %s16 = ssub.s32 128, 128
      %17 = vsyncadd [#allocation4], %s16
      %s19 = sshll.u32 [#allocation3], 4
      %s20 = int_to_ptr.vmem [resolvable:$true] %s19
      %22 = dma.hbm_to_vmem [thread:$0]  %s0, 128, %s20, [#allocation4]
    $region5: #{tpu_custom_call.1} parent=1 // pred_fallthru
      _
    // Predicated region
    $region6: #{tpu_custom_call.1} parent=1 // pred_check
      _
    $region7: #{tpu_custom_call.1} parent=1 // pred_check_branch
      %24 = sbr.rel (0) target = $region9
    $region8: #{tpu_custom_call.1} parent=1 // pred_region
      _
    $region9: #{tpu_custom_call.1} parent=1 // pred_fallthru
      _
    // Predicated region
    $region10: #{tpu_custom_call.1} parent=1 // pred_check
      _
    $region11: #{tpu_custom_call.1} parent=1 // pred_check_branch
      %26 = sbr.rel (0) target = $region13
    $region12: #{tpu_custom_call.1} parent=1 // pred_region
      _
    $region13: #{tpu_custom_call.1} parent=1 // pred_fallthru
      _
    // Predicated region
    $region14: #{tpu_custom_call.1} parent=1 // pred_check
      _
    $region15: #{tpu_custom_call.1} parent=1 // pred_check_branch
      %28 = sbr.rel (0) target = $region17
    $region16: #{tpu_custom_call.1} parent=1 // pred_region
      _
    $region17: #{tpu_custom_call.1} parent=1 // pred_fallthru
      _
    // Predicated region
    $region18: #{tpu_custom_call.1} parent=1 // pred_check
      _
    $region19: #{tpu_custom_call.1} parent=1 // pred_check_branch
      %30 = sbr.rel (0) target = $region21
    $region20: #{tpu_custom_call.1} parent=1 // pred_region
      _
    $region21: #{tpu_custom_call.1} parent=1 // pred_fallthru
      _
    // Predicated region
    $region22: #{tpu_custom_call.1} parent=1 // pred_check
      _
    $region23: #{tpu_custom_call.1} parent=1 // pred_check_branch
      %32 = sbr.rel (0) target = $region25
    $region24: #{tpu_custom_call.1} parent=1 // pred_region
      %33 = dma.done [#allocation4], 128
    $region25: #{tpu_custom_call.1} parent=1 // pred_fallthru
      _
    %v34 = vld [vmem:[#allocation3] sm:$0xff]
    %v35 = vld [vmem:[%s1] sm:$0x1]
    %v37 = vlaneseq
    %v38 = vshrl.u32 %v37, 7
    %v39 = vsub.s32 0, %v38
    %v40 = vrot.slane %v35, %v39
    %v42 = vmul.f32 %v34, %v40
    %vm43 = vcmask 162816
    %v44 = vsel %vm43, %v42, 0.0
    %45 = vadd.xlane.f32.xlu0 %v44
    %v46 = vpop.xlane.xlu0 %45
    %s47 = sld [smem:[#allocation2]]
    %v48 = vstv %s47
    %v49 = vadd.f32 %v46, %v48
    %v50 = vmax.f32 %v49, 0.0
    %v51 = vld [vmem:[%s3] sm:$0x1]
    %v53 = vlaneseq
    %v54 = vshrl.u32 %v53, 7
    %v55 = vsub.s32 0, %v54
    %v56 = vrot.slane %v51, %v55
    %v58 = vmul.f32 %v50, %v56
    %v59 = vld [vmem:[%s4] sm:$0x1]
    %v61 = vlaneseq
    %v62 = vshrl.u32 %v61, 7
    %v63 = vsub.s32 0, %v62
    %v64 = vrot.slane %v59, %v63
    %v66 = vadd.f32 %v58, %v64
    %v67 = vxor.u32 %v66, 2147483648
    %v68 = vmul.f32 %v67, 1.442695
    %v69 = vpow.pop %v68
    %v70 = vadd.f32 %v69, 1.0
    %v71 = vrcp.pop %v70
    %v72 = vmul.f32 1.0, %v71
    %73 = vst.msk [vmem:[#allocation6] sm:$0xff] %vm43, %v72
    // Predicated region
    $region26: #{tpu_custom_call.1} parent=1 // pred_check
      _
    $region27: #{tpu_custom_call.1} parent=1 // pred_check_branch
      %75 = sbr.rel (0) target = $region29
    $region28: #{tpu_custom_call.1} parent=1 // pred_region
      %s77 = ssub.s32 128, 128
      %78 = vsyncadd [#allocation5], %s77
      %s80 = sshll.u32 [#allocation6], 4
      %s81 = int_to_ptr.vmem [resolvable:$true] %s80
      %83 = dma.vmem_to_hbm [thread:$0]  %s81, 128, %s5, [#allocation5]
    $region29: #{tpu_custom_call.1} parent=1 // pred_fallthru
      _
    // Predicated region
    $region30: #{tpu_custom_call.1} parent=1 // pred_check
      _
    $region31: #{tpu_custom_call.1} parent=1 // pred_check_branch
      %85 = sbr.rel (0) target = $region33
    $region32: #{tpu_custom_call.1} parent=1 // pred_region
      %86 = dma.done [#allocation5], 128
    $region33: #{tpu_custom_call.1} parent=1 // pred_fallthru
      _
    %87 = vsyncpa [#allocation4], 1
    %88 = vsyncpa [#allocation5], 1

</llo_original>
